<compile_context>
chip_gen: v7x
topology: tpu7x:2x2x1
jax: 0.10.0
libtpu: 0.0.40
codegen_flags: <defaults>
</compile_context>

<pallas_src>
import functools
import math

import jax
import jax.numpy as jnp
from jax.experimental import pallas as pl
from jax.experimental.pallas import tpu as pltpu


# ---------------------------------------------------------------------------
# Kernel: channel LayerNorm over a (C, tile) slab. Lane axis = spatial tile.
# ---------------------------------------------------------------------------
def _layernorm3d_kernel(x_ref, g_ref, b_ref, o_ref, *, eps):
    # x_ref: (C, T)   g_ref/b_ref: (C, 1)   o_ref: (C, T)
    x = x_ref[...].astype(jnp.float32)
    mean = jnp.mean(x, axis=0, keepdims=True)                      # (1, T)
    var = jnp.mean(jnp.square(x - mean), axis=0, keepdims=True)    # unbiased=False
    std = jnp.sqrt(var)
    # Exactly the PyTorch formula: divide by (std + eps), NOT sqrt(var + eps).
    y = (x - mean) / (std + eps) * g_ref[...] + b_ref[...]
    o_ref[...] = y.astype(o_ref.dtype)


def _pick_tile(S, max_tile=2048):
    """Largest 128-multiple tile (<= max_tile) dividing S (padded up to 128)."""
    Sp = ((S + 127) // 128) * 128
    best = 128
    t = 128
    while t <= min(Sp, max_tile):
        if Sp % t == 0:
            best = t
        t += 128
    return best, Sp


def layernorm3d(x, g, b, *, eps=1e-5, max_tile=2048):
    """x: (N, C, D, H, W); g, b: any shape broadcastable from (1, C, 1, 1, 1)."""
    N, C, D, H, W = x.shape
    S = D * H * W
    x2 = x.reshape(N, C, S)                      # free reshape (contiguous dims)

    tile, Sp = _pick_tile(S, max_tile)
    if Sp != S:
        # Ragged spatial extent: pad the lane axis (sliced off afterwards).
        x2 = jnp.pad(x2, ((0, 0), (0, 0), (0, Sp - S)))

    g2 = jnp.asarray(g, jnp.float32).reshape(C, 1)
    b2 = jnp.asarray(b, jnp.float32).reshape(C, 1)

    out = pl.pallas_call(
        functools.partial(_layernorm3d_kernel, eps=float(eps)),
        out_shape=jax.ShapeDtypeStruct((N, C, Sp), x.dtype),
        grid=(N, Sp // tile),
        in_specs=[
            pl.BlockSpec((None, C, tile), lambda n, s: (n, 0, s)),
            pl.BlockSpec((C, 1), lambda n, s: (0, 0)),
            pl.BlockSpec((C, 1), lambda n, s: (0, 0)),
        ],
        out_specs=pl.BlockSpec((None, C, tile), lambda n, s: (n, 0, s)),
        compiler_params=pltpu.CompilerParams(
            dimension_semantics=("parallel", "parallel")
        ),
    )(x2, g2, b2)

    if Sp != S:
        out = out[:, :, :S]
    return out.reshape(N, C, D, H, W)


# ---------------------------------------------------------------------------
# PreNorm3D forward: fn(LayerNorm3D(x))
# ---------------------------------------------------------------------------
def prenorm3d(x, params, fn=None, *, eps=1e-5):
    """params: {"g": (1,C,1,1,1), "b": (1,C,1,1,1)}.  fn: optional JAX callable."""
    y = layernorm3d(x, params["g"], params["b"], eps=eps)
    # TODO(synk): `fn` is an arbitrary wrapped nn.Module in PyTorch; here it is
    # any JAX callable applied after the Pallas LayerNorm (identity if None).
    return y if fn is None else fn(y)


# ---------------------------------------------------------------------------
# Pure-JAX reference (independent of the Pallas implementation)
# ---------------------------------------------------------------------------
def reference(x, params, fn=None, eps=1e-5):
    xf = x.astype(jnp.float32)
    mean = jnp.mean(xf, axis=1, keepdims=True)
    var = jnp.mean(jnp.square(xf - mean), axis=1, keepdims=True)   # unbiased=False
    std = jnp.sqrt(var)
    y = (xf - mean) / (std + eps) * params["g"] + params["b"]
    y = y.astype(x.dtype)
    return y if fn is None else fn(y)


if __name__ == "__main__":
    key = jax.random.PRNGKey(0)
    kx, kg, kb, kx2 = jax.random.split(key, 4)

    # Shapes consistent with the module: batch=2, channels(dim)=4, spatial=16^3.
    B, C, S = 2, 4, 16
    x = jax.random.normal(kx, (B, C, S, S, S), jnp.float32)            # NCDHW
    params = {
        "g": 1.0 + 0.1 * jax.random.normal(kg, (1, C, 1, 1, 1), jnp.float32),
        "b": 0.05 * jax.random.normal(kb, (1, C, 1, 1, 1), jnp.float32),
    }

    run = jax.jit(lambda xx, pp: prenorm3d(xx, pp))
    out = jax.block_until_ready(run(x, params))
    assert out.shape == (B, C, S, S, S)

    ref = reference(x, params)
    err = float(jnp.max(jnp.abs(out - ref)))
    assert err < 1e-4, f"max abs error too large: {err}"

    # Ragged spatial extent (exercises the pad-and-slice fallback; S=210).
    x_r = jax.random.normal(kx2, (1, C, 5, 6, 7), jnp.float32)
    out_r = jax.block_until_ready(run(x_r, params))
    err_r = float(jnp.max(jnp.abs(out_r - reference(x_r, params))))
    assert out_r.shape == (1, C, 5, 6, 7)
    assert err_r < 1e-4, f"ragged-shape max abs error too large: {err_r}"

    print("KERNEL_OK")
</pallas_src>

<mosaic_0001>
module attributes {stable_mosaic.version = 11 : i64} {
  func.func @_layernorm3d_kernel(%arg0: i32, %arg1: i32, %arg2: memref<1x4x2048xf32, #tpu.memory_space<vmem>>, %arg3: memref<4x1xf32, #tpu.memory_space<vmem>>, %arg4: memref<4x1xf32, #tpu.memory_space<vmem>>, %arg5: memref<1x4x2048xf32, #tpu.memory_space<vmem>>) attributes {dimension_semantics = [#tpu.dimension_semantics<parallel>, #tpu.dimension_semantics<parallel>], iteration_bounds = array<i64: 2, 2>, scalar_prefetch = 0 : i64, scratch_operands = 0 : i64, tpu.core_type = #tpu.core_type<tc>, window_params = [{transform_indices = @transform_0, window_bounds = array<i64: 1, 4, 2048>}, {pipeline_mode = #tpu.pipeline_mode<synchronous>, transform_indices = @transform_1, window_bounds = array<i64: 4, 1>}, {pipeline_mode = #tpu.pipeline_mode<synchronous>, transform_indices = @transform_2, window_bounds = array<i64: 4, 1>}, {transform_indices = @transform_3, window_bounds = array<i64: 1, 4, 2048>}]} {
    %c0 = arith.constant 0 : index
    %c0_0 = arith.constant 0 : index
    %c0_1 = arith.constant 0 : index
    %0 = vector.load %arg2[%c0, %c0_0, %c0_1] : memref<1x4x2048xf32, #tpu.memory_space<vmem>>, vector<1x4x2048xf32>
    %1 = vector.shape_cast %0 : vector<1x4x2048xf32> to vector<4x2048xf32>
    %cst = arith.constant dense<0.000000e+00> : vector<2048xf32>
    %2 = vector.multi_reduction <add>, %1, %cst [0] : vector<4x2048xf32> to vector<2048xf32>
    %3 = vector.shape_cast %2 : vector<2048xf32> to vector<1x2048xf32>
    %cst_2 = arith.constant 4.000000e+00 : f32
    %4 = vector.broadcast %cst_2 : f32 to vector<1x2048xf32>
    %5 = arith.divf %3, %4 : vector<1x2048xf32>
    %6 = vector.broadcast %5 : vector<1x2048xf32> to vector<4x2048xf32>
    %7 = arith.subf %1, %6 : vector<4x2048xf32>
    %8 = arith.mulf %7, %7 : vector<4x2048xf32>
    %cst_3 = arith.constant dense<0.000000e+00> : vector<2048xf32>
    %9 = vector.multi_reduction <add>, %8, %cst_3 [0] : vector<4x2048xf32> to vector<2048xf32>
    %10 = vector.shape_cast %9 : vector<2048xf32> to vector<1x2048xf32>
    %cst_4 = arith.constant 4.000000e+00 : f32
    %11 = vector.broadcast %cst_4 : f32 to vector<1x2048xf32>
    %12 = arith.divf %10, %11 : vector<1x2048xf32>
    %13 = math.sqrt %12 : vector<1x2048xf32>
    %14 = vector.broadcast %5 : vector<1x2048xf32> to vector<4x2048xf32>
    %15 = arith.subf %1, %14 : vector<4x2048xf32>
    %cst_5 = arith.constant 9.99999974E-6 : f32
    %16 = vector.broadcast %cst_5 : f32 to vector<1x2048xf32>
    %17 = arith.addf %13, %16 : vector<1x2048xf32>
    %18 = vector.broadcast %17 : vector<1x2048xf32> to vector<4x2048xf32>
    %19 = arith.divf %15, %18 : vector<4x2048xf32>
    %c0_6 = arith.constant 0 : index
    %c0_7 = arith.constant 0 : index
    %20 = vector.load %arg3[%c0_6, %c0_7] : memref<4x1xf32, #tpu.memory_space<vmem>>, vector<4x1xf32>
    %21 = vector.broadcast %20 : vector<4x1xf32> to vector<4x2048xf32>
    %22 = arith.mulf %19, %21 : vector<4x2048xf32>
    %c0_8 = arith.constant 0 : index
    %c0_9 = arith.constant 0 : index
    %23 = vector.load %arg4[%c0_8, %c0_9] : memref<4x1xf32, #tpu.memory_space<vmem>>, vector<4x1xf32>
    %24 = vector.broadcast %23 : vector<4x1xf32> to vector<4x2048xf32>
    %25 = arith.addf %22, %24 : vector<4x2048xf32>
    %c0_10 = arith.constant 0 : index
    %c0_11 = arith.constant 0 : index
    %c0_12 = arith.constant 0 : index
    %26 = vector.load %arg5[%c0_10, %c0_11, %c0_12] : memref<1x4x2048xf32, #tpu.memory_space<vmem>>, vector<1x4x2048xf32>
    %27 = vector.shape_cast %26 : vector<1x4x2048xf32> to vector<4x2048xf32>
    %28 = vector.shape_cast %25 : vector<4x2048xf32> to vector<1x4x2048xf32>
    tpu.vector_store %arg5[%c0_10, %c0_11, %c0_12], %28 {strides = array<i32>} : memref<1x4x2048xf32, #tpu.memory_space<vmem>>, vector<1x4x2048xf32>,
    return
  }
  func.func @transform_0(%arg0: i32, %arg1: i32) -> (i32, i32, i32) {
    %c0_i32 = arith.constant 0 : i32
    %c0_i32_0 = arith.constant 0 : i32
    return %arg0, %c0_i32, %arg1 : i32, i32, i32
  }
  func.func @transform_1(%arg0: i32, %arg1: i32) -> (i32, i32) {
    %c0_i32 = arith.constant 0 : i32
    %c0_i32_0 = arith.constant 0 : i32
    %c0_i32_1 = arith.constant 0 : i32
    return %c0_i32, %c0_i32_0 : i32, i32
  }
  func.func @transform_2(%arg0: i32, %arg1: i32) -> (i32, i32) {
    %c0_i32 = arith.constant 0 : i32
    %c0_i32_0 = arith.constant 0 : i32
    %c0_i32_1 = arith.constant 0 : i32
    return %c0_i32, %c0_i32_0 : i32, i32
  }
  func.func @transform_3(%arg0: i32, %arg1: i32) -> (i32, i32, i32) {
    %c0_i32 = arith.constant 0 : i32
    %c0_i32_0 = arith.constant 0 : i32
    return %arg0, %c0_i32, %arg1 : i32, i32, i32
  }
}

</mosaic_0001>

<llo_original>
// kernel: _lambda_.1
$region0: #{_lambda_.1}
  #allocation0 [shape = 'u32[]', space=smem, size = 0x4, offset = 0x4, fixed_abs, tag = 'smem constant byte address 0x4 - core index']
  #allocation1 [shape = 'u32[144,128]{1,0:T(1,128)}', space=vmem, size = 0x12000, scoped, tag = 'internal scratch']
  %s0 = inlined_call_operand.vmem [shape: f32[2,4,4096], index: 0, kind: input, shape index: {}]
  %s1 = inlined_call_operand.vmem [shape: f32[4,1], index: 1, kind: input, shape index: {}]
  %s2 = inlined_call_operand.vmem [shape: f32[4,1], index: 2, kind: input, shape index: {}]
  %s3 = inlined_call_operand.vmem [shape: f32[2,4,4096], index: 3, kind: output, shape index: {}]
  %s4 = sld [smem:[#allocation0]]
  $region45: #{_lambda_.1} parent=0
    _
  %s6 = ssub.s32 1, %s4
  %s7 = scalar_select 0, %s6, %s4
  loop: start=0, step=1, limit=6
  $region2: #{_lambda_.1} parent=0 // loop_pre_header
    _
  $region3: #{_lambda_.1} parent=0 // loop_header
    %s9 = sphi 0, %s13
    %p10 = scmp.ge.s32.totalorder %s9, 6
    %s16 = sphi 0, %s28
    %s17 = sphi 0, %s24
    %s18 = sphi 0, %s16
    %s19 = sphi 0, %s17
    %s20 = sphi 0, %s18
    %s21 = sphi 0, %s19
    %s33 = sphi 0, %s35
    %s36 = sphi 0, %s33
    %s37 = sphi 0, %s36
    %s53 = sphi 0, %s37
    %s57 = sphi 0, %s57
    %s59 = sphi 0, %s57
    %s60 = sphi 0, %s59
    %s74 = sphi 0, %s60
    %s78 = sphi 0, %s78
    %s80 = sphi 0, %s78
    %s81 = sphi 0, %s80
    %s95 = sphi 0, %s81
    %s103 = sphi 0, %s105
    %s106 = sphi 0, %s103
    %s107 = sphi 0, %s106
    %s123 = sphi 0, %s107
  $region4: #{_lambda_.1} parent=0 // loop_header_branch
    %12 = sbr.rel (%p10) target = $region8
  $region5: #{_lambda_.1} parent=0 // loop_body
    %s14 = ssub.s32 %s9, 1
    %s15 = ssub.s32 %s9, 2
    %s22 = sadd.s32 1, %s17
    %p23 = scmp.ge.s32.totalorder %s22, 2
    %s24 = scalar_select %p23, 0, %s22
    %s25 = sadd.s32 1, %s16
    %s26 = scalar_select %p23, %s25, %s16
    %p27 = scmp.ge.s32.totalorder %s26, 2
    %s28 = scalar_select %p27, 0, %s26
    %s29 = ssub.s32 %s16, %s28
    %s30 = ssub.s32 %s17, %s24
    %s31 = sor.u32 %s29, %s30
    %p32 = scmp.eq.s32.totalorder %s31, 0
    %s34 = sadd.s32 %s33, 1
    %s35 = scalar_select %p32, %s33, %s34
    %p38 = pneg %p32
    %p39 = scmp.eq.s32.totalorder %s9, 3
    %p40 = por %p38, %p39
    %p41 = scmp.ne.s32.totalorder %s33, %s36
    %p42 = scmp.eq.s32.totalorder %s9, 0
    %p43 = por %p41, %p42
    %p44 = scmp.ne.s32.totalorder %s33, %s36
    %p45 = scmp.eq.s32.totalorder %s14, 3
    %p46 = por %p44, %p45
    %p47 = scmp.ne.s32.totalorder %s36, %s37
    %p48 = scmp.eq.s32.totalorder %s14, 0
    %p49 = por %p47, %p48
    %p50 = scmp.ne.s32.totalorder %s36, %s37
    %p51 = scmp.eq.s32.totalorder %s15, 3
    %p52 = por %p50, %p51
    %p54 = scmp.ne.s32.totalorder %s37, %s53
    %p55 = scmp.eq.s32.totalorder %s15, 0
    %p56 = por %p54, %p55
    %s58 = sadd.s32 %s57, 1
    %p61 = scmp.eq.s32.totalorder %s9, 3
    %p62 = scmp.ne.s32.totalorder %s57, %s59
    %p63 = scmp.eq.s32.totalorder %s9, 0
    %p64 = por %p62, %p63
    %p65 = scmp.ne.s32.totalorder %s57, %s59
    %p66 = scmp.eq.s32.totalorder %s14, 3
    %p67 = por %p65, %p66
    %p68 = scmp.ne.s32.totalorder %s59, %s60
    %p69 = scmp.eq.s32.totalorder %s14, 0
    %p70 = por %p68, %p69
    %p71 = scmp.ne.s32.totalorder %s59, %s60
    %p72 = scmp.eq.s32.totalorder %s15, 3
    %p73 = por %p71, %p72
    %p75 = scmp.ne.s32.totalorder %s60, %s74
    %p76 = scmp.eq.s32.totalorder %s15, 0
    %p77 = por %p75, %p76
    %s79 = sadd.s32 %s78, 1
    %p82 = scmp.eq.s32.totalorder %s9, 3
    %p83 = scmp.ne.s32.totalorder %s78, %s80
    %p84 = scmp.eq.s32.totalorder %s9, 0
    %p85 = por %p83, %p84
    %p86 = scmp.ne.s32.totalorder %s78, %s80
    %p87 = scmp.eq.s32.totalorder %s14, 3
    %p88 = por %p86, %p87
    %p89 = scmp.ne.s32.totalorder %s80, %s81
    %p90 = scmp.eq.s32.totalorder %s14, 0
    %p91 = por %p89, %p90
    %p92 = scmp.ne.s32.totalorder %s80, %s81
    %p93 = scmp.eq.s32.totalorder %s15, 3
    %p94 = por %p92, %p93
    %p96 = scmp.ne.s32.totalorder %s81, %s95
    %p97 = scmp.eq.s32.totalorder %s15, 0
    %p98 = por %p96, %p97
    %s99 = ssub.s32 %s16, %s28
    %s100 = ssub.s32 %s17, %s24
    %s101 = sor.u32 %s99, %s100
    %p102 = scmp.eq.s32.totalorder %s101, 0
    %s104 = sadd.s32 %s103, 1
    %s105 = scalar_select %p102, %s103, %s104
    %p108 = pneg %p102
    %p109 = scmp.eq.s32.totalorder %s9, 3
    %p110 = por %p108, %p109
    %p111 = scmp.ne.s32.totalorder %s103, %s106
    %p112 = scmp.eq.s32.totalorder %s9, 0
    %p113 = por %p111, %p112
    %p114 = scmp.ne.s32.totalorder %s103, %s106
    %p115 = scmp.eq.s32.totalorder %s14, 3
    %p116 = por %p114, %p115
    %p117 = scmp.ne.s32.totalorder %s106, %s107
    %p118 = scmp.eq.s32.totalorder %s14, 0
    %p119 = por %p117, %p118
    %p120 = scmp.ne.s32.totalorder %s106, %s107
    %p121 = scmp.eq.s32.totalorder %s15, 3
    %p122 = por %p120, %p121
    %p124 = scmp.ne.s32.totalorder %s107, %s123
    %p125 = scmp.eq.s32.totalorder %s15, 0
    %p126 = por %p124, %p125
    %p127 = scmp.le.s32.totalorder 1, %s9
    %p128 = scmp.lt.s32.totalorder %s9, 5
    %p129 = pnand %p127, %p128
    %p130 = pneg %p129
    // Predicated region
    $region9: #{_lambda_.1} parent=5 // pred_check
      _
    $region10: #{_lambda_.1} parent=5 // pred_check_branch
      %132 = sbr.rel (%p129) target = $region12
    $region11: #{_lambda_.1} parent=5 // pred_region
      %s133 = ssub.s32 %s9, 1
      // Predicated region
      $region13: #{_lambda_.1} parent=11 // pred_check
        %p134 = pneg %p70
      $region14: #{_lambda_.1} parent=11 // pred_check_branch
        %136 = sbr.rel (%p134) target = $region16
      $region15: #{_lambda_.1} parent=11 // pred_region
        _
      $region16: #{_lambda_.1} parent=11 // pred_fallthru
        _
      // Predicated region
      $region17: #{_lambda_.1} parent=11 // pred_check
        %p137 = pneg %p91
      $region18: #{_lambda_.1} parent=11 // pred_check_branch
        %139 = sbr.rel (%p137) target = $region20
      $region19: #{_lambda_.1} parent=11 // pred_region
        _
      $region20: #{_lambda_.1} parent=11 // pred_fallthru
        _
    $region12: #{_lambda_.1} parent=5 // pred_fallthru
      _
    %p140 = scmp.lt.s32.totalorder %s9, 4
    // Predicated region
    $region21: #{_lambda_.1} parent=5 // pred_check
      %p141 = pneg %p140
    $region22: #{_lambda_.1} parent=5 // pred_check_branch
      %143 = sbr.rel (%p141) target = $region24
    $region23: #{_lambda_.1} parent=5 // pred_region
      // Predicated region
      $region25: #{_lambda_.1} parent=23 // pred_check
        %p144 = pneg %p43
      $region26: #{_lambda_.1} parent=23 // pred_check_branch
        %146 = sbr.rel (%p144) target = $region28
      $region27: #{_lambda_.1} parent=23 // pred_region
        %s147 = smul.u32 16, %s17
        %p148 = scmp.lt.s32.totalorder %s16, 1
        %s149 = scalar_select %p148, %s16, 1
        %p150 = scmp.lt.s32.totalorder %s147, 31
        %s151 = scalar_select %p150, %s147, 31
        %s152 = smul.addr %s149, 32
        %s153 = sadd.s32 %s151, %s152
        %s154 = smul.addr %s153, 4
        %s155 = scalar_lea.vmem %s0, %s154
        %s156 = smul.u32 16, %s17
      $region28: #{_lambda_.1} parent=23 // pred_fallthru
        _
    $region24: #{_lambda_.1} parent=5 // pred_fallthru
      _
    %p157 = scmp.le.s32.totalorder 1, %s9
    %p158 = scmp.lt.s32.totalorder %s9, 5
    %p159 = pnand %p157, %p158
    %p160 = pneg %p159
    // Predicated region
    $region29: #{_lambda_.1} parent=5 // pred_check
      _
    $region30: #{_lambda_.1} parent=5 // pred_check_branch
      %162 = sbr.rel (%p159) target = $region32
    $region31: #{_lambda_.1} parent=5 // pred_region
      %s163 = ssub.s32 %s9, 1
      %s164 = smul.u32 16, %s19
      %p165 = scmp.lt.s32.totalorder %s18, 1
      %s166 = scalar_select %p165, %s18, 1
      %p167 = scmp.lt.s32.totalorder %s164, 31
      %s168 = scalar_select %p167, %s164, 31
      %s169 = smul.addr %s166, 32
      %s170 = sadd.s32 %s168, %s169
      %s171 = smul.addr %s170, 4
      %s172 = scalar_lea.vmem %s0, %s171
      %p173 = pneg %p49
      %p174 = pneg %p46
      %p175 = pneg %p70
      %p176 = pneg %p67
      %p177 = pneg %p91
      %p178 = pneg %p88
      %p179 = pneg %p119
      %p180 = pneg %p116
      %s181 = smul.u32 16, %s19
      %p182 = scmp.lt.s32.totalorder %s18, 1
      %s183 = scalar_select %p182, %s18, 1
      %p184 = scmp.lt.s32.totalorder %s181, 31
      %s185 = scalar_select %p184, %s181, 31
      %s186 = smul.addr %s183, 32
      %s187 = sadd.s32 %s185, %s186
      %s188 = smul.addr %s187, 4
      %s189 = scalar_lea.vmem %s3, %s188
      %s190 = smul.u32 16, %s19
      %p191 = scmp.lt.s32.totalorder %s18, 1
      %s192 = scalar_select %p191, %s18, 1
      %p193 = scmp.lt.s32.totalorder %s190, 31
      %s194 = scalar_select %p193, %s190, 31
      %s195 = smul.addr %s192, 32
      %s196 = sadd.s32 %s194, %s195
      %s197 = smul.addr %s196, 4
      %s198 = scalar_lea.vmem %s0, %s197
      %s199 = smul.u32 16, %s19
      %s200 = smul.u32 16, %s19
      %p201 = scmp.lt.s32.totalorder %s18, 1
      %s202 = scalar_select %p201, %s18, 1
      %p203 = scmp.lt.s32.totalorder %s200, 31
      %s204 = scalar_select %p203, %s200, 31
      %s205 = smul.addr %s202, 32
      %s206 = sadd.s32 %s204, %s205
      %s207 = smul.addr %s206, 4
      %s208 = scalar_lea.vmem %s3, %s207
      %s209 = smul.u32 16, %s19
      %v210 = vld [vmem:[%s198] sm:$0xff]
      %v211 = vld [vmem:[%s198 + $0x8] sm:$0xff]
      %v212 = vld [vmem:[%s198 + $0x10] sm:$0xff]
      %v213 = vld [vmem:[%s198 + $0x18] sm:$0xff]
      %v214 = vld [vmem:[%s198 + $0x20] sm:$0xff]
      %v215 = vld [vmem:[%s198 + $0x28] sm:$0xff]
      %v216 = vld [vmem:[%s198 + $0x30] sm:$0xff]
      %v217 = vld [vmem:[%s198 + $0x38] sm:$0xff]
      %v226 = vcombine.high %v210, %v210
      %v227 = vcombine.high %v211, %v211
      %v228 = vcombine.high %v212, %v212
      %v229 = vcombine.high %v213, %v213
      %v230 = vcombine.high %v214, %v214
      %v231 = vcombine.high %v215, %v215
      %v232 = vcombine.high %v216, %v216
      %v233 = vcombine.high %v217, %v217
      %vm242 = vcmask 1043456
      %v243 = vsel %vm242, %v210, 0.0
      %v244 = vrot.slane %v243, 4
      %v245 = vadd.f32 %v243, %v244
      %v246 = vrot.slane %v245, 2
      %v247 = vadd.f32 %v245, %v246
      %v248 = vrot.slane %v247, 1
      %v249 = vadd.f32 %v247, %v248
      %v250 = vsel %vm242, %v226, 0.0
      %v251 = vrot.slane %v250, 4
      %v252 = vadd.f32 %v250, %v251
      %v253 = vrot.slane %v252, 2
      %v254 = vadd.f32 %v252, %v253
      %v255 = vrot.slane %v254, 1
      %v256 = vadd.f32 %v254, %v255
      %v257 = vsel %vm242, %v211, 0.0
      %v258 = vrot.slane %v257, 4
      %v259 = vadd.f32 %v257, %v258
      %v260 = vrot.slane %v259, 2
      %v261 = vadd.f32 %v259, %v260
      %v262 = vrot.slane %v261, 1
      %v263 = vadd.f32 %v261, %v262
      %v264 = vsel %vm242, %v227, 0.0
      %v265 = vrot.slane %v264, 4
      %v266 = vadd.f32 %v264, %v265
      %v267 = vrot.slane %v266, 2
      %v268 = vadd.f32 %v266, %v267
      %v269 = vrot.slane %v268, 1
      %v270 = vadd.f32 %v268, %v269
      %v271 = vsel %vm242, %v212, 0.0
      %v272 = vrot.slane %v271, 4
      %v273 = vadd.f32 %v271, %v272
      %v274 = vrot.slane %v273, 2
      %v275 = vadd.f32 %v273, %v274
      %v276 = vrot.slane %v275, 1
      %v277 = vadd.f32 %v275, %v276
      %v278 = vsel %vm242, %v228, 0.0
      %v279 = vrot.slane %v278, 4
      %v280 = vadd.f32 %v278, %v279
      %v281 = vrot.slane %v280, 2
      %v282 = vadd.f32 %v280, %v281
      %v283 = vrot.slane %v282, 1
      %v284 = vadd.f32 %v282, %v283
      %v285 = vsel %vm242, %v213, 0.0
      %v286 = vrot.slane %v285, 4
      %v287 = vadd.f32 %v285, %v286
      %v288 = vrot.slane %v287, 2
      %v289 = vadd.f32 %v287, %v288
      %v290 = vrot.slane %v289, 1
      %v291 = vadd.f32 %v289, %v290
      %v292 = vsel %vm242, %v229, 0.0
      %v293 = vrot.slane %v292, 4
      %v294 = vadd.f32 %v292, %v293
      %v295 = vrot.slane %v294, 2
      %v296 = vadd.f32 %v294, %v295
      %v297 = vrot.slane %v296, 1
      %v298 = vadd.f32 %v296, %v297
      %v299 = vsel %vm242, %v214, 0.0
      %v300 = vrot.slane %v299, 4
      %v301 = vadd.f32 %v299, %v300
      %v302 = vrot.slane %v301, 2
      %v303 = vadd.f32 %v301, %v302
      %v304 = vrot.slane %v303, 1
      %v305 = vadd.f32 %v303, %v304
      %v306 = vsel %vm242, %v230, 0.0
      %v307 = vrot.slane %v306, 4
      %v308 = vadd.f32 %v306, %v307
      %v309 = vrot.slane %v308, 2
      %v310 = vadd.f32 %v308, %v309
      %v311 = vrot.slane %v310, 1
      %v312 = vadd.f32 %v310, %v311
      %v313 = vsel %vm242, %v215, 0.0
      %v314 = vrot.slane %v313, 4
      %v315 = vadd.f32 %v313, %v314
      %v316 = vrot.slane %v315, 2
      %v317 = vadd.f32 %v315, %v316
      %v318 = vrot.slane %v317, 1
      %v319 = vadd.f32 %v317, %v318
      %v320 = vsel %vm242, %v231, 0.0
      %v321 = vrot.slane %v320, 4
      %v322 = vadd.f32 %v320, %v321
      %v323 = vrot.slane %v322, 2
      %v324 = vadd.f32 %v322, %v323
      %v325 = vrot.slane %v324, 1
      %v326 = vadd.f32 %v324, %v325
      %v327 = vsel %vm242, %v216, 0.0
      %v328 = vrot.slane %v327, 4
      %v329 = vadd.f32 %v327, %v328
      %v330 = vrot.slane %v329, 2
      %v331 = vadd.f32 %v329, %v330
      %v332 = vrot.slane %v331, 1
      %v333 = vadd.f32 %v331, %v332
      %v334 = vsel %vm242, %v232, 0.0
      %v335 = vrot.slane %v334, 4
      %v336 = vadd.f32 %v334, %v335
      %v337 = vrot.slane %v336, 2
      %v338 = vadd.f32 %v336, %v337
      %v339 = vrot.slane %v338, 1
      %v340 = vadd.f32 %v338, %v339
      %v341 = vsel %vm242, %v217, 0.0
      %v342 = vrot.slane %v341, 4
      %v343 = vadd.f32 %v341, %v342
      %v344 = vrot.slane %v343, 2
      %v345 = vadd.f32 %v343, %v344
      %v346 = vrot.slane %v345, 1
      %v347 = vadd.f32 %v345, %v346
      %v348 = vsel %vm242, %v233, 0.0
      %v349 = vrot.slane %v348, 4
      %v350 = vadd.f32 %v348, %v349
      %v351 = vrot.slane %v350, 2
      %v352 = vadd.f32 %v350, %v351
      %v353 = vrot.slane %v352, 1
      %v354 = vadd.f32 %v352, %v353
      %v355 = vrcp.pop 4.0
      %v356 = vmul.f32 %v249, %v355
      %v357 = vmul.f32 %v256, %v355
      %v358 = vmul.f32 %v263, %v355
      %v359 = vmul.f32 %v270, %v355
      %v360 = vmul.f32 %v277, %v355
      %v361 = vmul.f32 %v284, %v355
      %v362 = vmul.f32 %v291, %v355
      %v363 = vmul.f32 %v298, %v355
      %v364 = vmul.f32 %v305, %v355
      %v365 = vmul.f32 %v312, %v355
      %v366 = vmul.f32 %v319, %v355
      %v367 = vmul.f32 %v326, %v355
      %v368 = vmul.f32 %v333, %v355
      %v369 = vmul.f32 %v340, %v355
      %v370 = vmul.f32 %v347, %v355
      %v371 = vmul.f32 %v354, %v355
      %v388 = vcombine.low %v356, %v357
      %v389 = vcombine.low %v358, %v359
      %v390 = vcombine.low %v360, %v361
      %v391 = vcombine.low %v362, %v363
      %v392 = vcombine.low %v364, %v365
      %v393 = vcombine.low %v366, %v367
      %v394 = vcombine.low %v368, %v369
      %v395 = vcombine.low %v370, %v371
      %v404 = vsub.f32 %v210, %v388
      %v405 = vsub.f32 %v211, %v389
      %v406 = vsub.f32 %v212, %v390
      %v407 = vsub.f32 %v213, %v391
      %v408 = vsub.f32 %v214, %v392
      %v409 = vsub.f32 %v215, %v393
      %v410 = vsub.f32 %v216, %v394
      %v411 = vsub.f32 %v217, %v395
      %v412 = vmul.f32 %v404, %v404
      %v413 = vmul.f32 %v405, %v405
      %v414 = vmul.f32 %v406, %v406
      %v415 = vmul.f32 %v407, %v407
      %v416 = vmul.f32 %v408, %v408
      %v417 = vmul.f32 %v409, %v409
      %v418 = vmul.f32 %v410, %v410
      %v419 = vmul.f32 %v411, %v411
      %v428 = vcombine.high %v412, %v412
      %v429 = vcombine.high %v413, %v413
      %v430 = vcombine.high %v414, %v414
      %v431 = vcombine.high %v415, %v415
      %v432 = vcombine.high %v416, %v416
      %v433 = vcombine.high %v417, %v417
      %v434 = vcombine.high %v418, %v418
      %v435 = vcombine.high %v419, %v419
      %v444 = vsel %vm242, %v412, 0.0
      %v445 = vrot.slane %v444, 4
      %v446 = vadd.f32 %v444, %v445
      %v447 = vrot.slane %v446, 2
      %v448 = vadd.f32 %v446, %v447
      %v449 = vrot.slane %v448, 1
      %v450 = vadd.f32 %v448, %v449
      %v451 = vsel %vm242, %v428, 0.0
      %v452 = vrot.slane %v451, 4
      %v453 = vadd.f32 %v451, %v452
      %v454 = vrot.slane %v453, 2
      %v455 = vadd.f32 %v453, %v454
      %v456 = vrot.slane %v455, 1
      %v457 = vadd.f32 %v455, %v456
      %v458 = vsel %vm242, %v413, 0.0
      %v459 = vrot.slane %v458, 4
      %v460 = vadd.f32 %v458, %v459
      %v461 = vrot.slane %v460, 2
      %v462 = vadd.f32 %v460, %v461
      %v463 = vrot.slane %v462, 1
      %v464 = vadd.f32 %v462, %v463
      %v465 = vsel %vm242, %v429, 0.0
      %v466 = vrot.slane %v465, 4
      %v467 = vadd.f32 %v465, %v466
      %v468 = vrot.slane %v467, 2
      %v469 = vadd.f32 %v467, %v468
      %v470 = vrot.slane %v469, 1
      %v471 = vadd.f32 %v469, %v470
      %v472 = vsel %vm242, %v414, 0.0
      %v473 = vrot.slane %v472, 4
      %v474 = vadd.f32 %v472, %v473
      %v475 = vrot.slane %v474, 2
      %v476 = vadd.f32 %v474, %v475
      %v477 = vrot.slane %v476, 1
      %v478 = vadd.f32 %v476, %v477
      %v479 = vsel %vm242, %v430, 0.0
      %v480 = vrot.slane %v479, 4
      %v481 = vadd.f32 %v479, %v480
      %v482 = vrot.slane %v481, 2
      %v483 = vadd.f32 %v481, %v482
      %v484 = vrot.slane %v483, 1
      %v485 = vadd.f32 %v483, %v484
      %v486 = vsel %vm242, %v415, 0.0
      %v487 = vrot.slane %v486, 4
      %v488 = vadd.f32 %v486, %v487
      %v489 = vrot.slane %v488, 2
      %v490 = vadd.f32 %v488, %v489
      %v491 = vrot.slane %v490, 1
      %v492 = vadd.f32 %v490, %v491
      %v493 = vsel %vm242, %v431, 0.0
      %v494 = vrot.slane %v493, 4
      %v495 = vadd.f32 %v493, %v494
      %v496 = vrot.slane %v495, 2
      %v497 = vadd.f32 %v495, %v496
      %v498 = vrot.slane %v497, 1
      %v499 = vadd.f32 %v497, %v498
      %v500 = vsel %vm242, %v416, 0.0
      %v501 = vrot.slane %v500, 4
      %v502 = vadd.f32 %v500, %v501
      %v503 = vrot.slane %v502, 2
      %v504 = vadd.f32 %v502, %v503
      %v505 = vrot.slane %v504, 1
      %v506 = vadd.f32 %v504, %v505
      %v507 = vsel %vm242, %v432, 0.0
      %v508 = vrot.slane %v507, 4
      %v509 = vadd.f32 %v507, %v508
      %v510 = vrot.slane %v509, 2
      %v511 = vadd.f32 %v509, %v510
      %v512 = vrot.slane %v511, 1
      %v513 = vadd.f32 %v511, %v512
      %v514 = vsel %vm242, %v417, 0.0
      %v515 = vrot.slane %v514, 4
      %v516 = vadd.f32 %v514, %v515
      %v517 = vrot.slane %v516, 2
      %v518 = vadd.f32 %v516, %v517
      %v519 = vrot.slane %v518, 1
      %v520 = vadd.f32 %v518, %v519
      %v521 = vsel %vm242, %v433, 0.0
      %v522 = vrot.slane %v521, 4
      %v523 = vadd.f32 %v521, %v522
      %v524 = vrot.slane %v523, 2
      %v525 = vadd.f32 %v523, %v524
      %v526 = vrot.slane %v525, 1
      %v527 = vadd.f32 %v525, %v526
      %v528 = vsel %vm242, %v418, 0.0
      %v529 = vrot.slane %v528, 4
      %v530 = vadd.f32 %v528, %v529
      %v531 = vrot.slane %v530, 2
      %v532 = vadd.f32 %v530, %v531
      %v533 = vrot.slane %v532, 1
      %v534 = vadd.f32 %v532, %v533
      %v535 = vsel %vm242, %v434, 0.0
      %v536 = vrot.slane %v535, 4
      %v537 = vadd.f32 %v535, %v536
      %v538 = vrot.slane %v537, 2
      %v539 = vadd.f32 %v537, %v538
      %v540 = vrot.slane %v539, 1
      %v541 = vadd.f32 %v539, %v540
      %v542 = vsel %vm242, %v419, 0.0
      %v543 = vrot.slane %v542, 4
      %v544 = vadd.f32 %v542, %v543
      %v545 = vrot.slane %v544, 2
      %v546 = vadd.f32 %v544, %v545
      %v547 = vrot.slane %v546, 1
      %v548 = vadd.f32 %v546, %v547
      %v549 = vsel %vm242, %v435, 0.0
      %v550 = vrot.slane %v549, 4
      %v551 = vadd.f32 %v549, %v550
      %v552 = vrot.slane %v551, 2
      %v553 = vadd.f32 %v551, %v552
      %v554 = vrot.slane %v553, 1
      %v555 = vadd.f32 %v553, %v554
      %v556 = vmul.f32 %v450, %v355
      %v557 = vmul.f32 %v457, %v355
      %v558 = vmul.f32 %v464, %v355
      %v559 = vmul.f32 %v471, %v355
      %v560 = vmul.f32 %v478, %v355
      %v561 = vmul.f32 %v485, %v355
      %v562 = vmul.f32 %v492, %v355
      %v563 = vmul.f32 %v499, %v355
      %v564 = vmul.f32 %v506, %v355
      %v565 = vmul.f32 %v513, %v355
      %v566 = vmul.f32 %v520, %v355
      %v567 = vmul.f32 %v527, %v355
      %v568 = vmul.f32 %v534, %v355
      %v569 = vmul.f32 %v541, %v355
      %v570 = vmul.f32 %v548, %v355
      %v571 = vmul.f32 %v555, %v355
      %v572 = vrsqrt.pop %v556
      %v573 = vmul.f32 %v556, %v572
      %vm574 = vcmp.eq.f32.partialorder %v556, inf
      %v575 = vsel %vm574, %v556, %v573
      %vm576 = vcmp.eq.f32.partialorder %v556, 0.0
      %v577 = vand.u32 %v556, 2147483648
      %v578 = vsel %vm576, %v577, %v575
      %v579 = vrsqrt.pop %v557
      %v580 = vmul.f32 %v557, %v579
      %vm581 = vcmp.eq.f32.partialorder %v557, inf
      %v582 = vsel %vm581, %v557, %v580
      %vm583 = vcmp.eq.f32.partialorder %v557, 0.0
      %v584 = vand.u32 %v557, 2147483648
      %v585 = vsel %vm583, %v584, %v582
      %v586 = vrsqrt.pop %v558
      %v587 = vmul.f32 %v558, %v586
      %vm588 = vcmp.eq.f32.partialorder %v558, inf
      %v589 = vsel %vm588, %v558, %v587
      %vm590 = vcmp.eq.f32.partialorder %v558, 0.0
      %v591 = vand.u32 %v558, 2147483648
      %v592 = vsel %vm590, %v591, %v589
      %v593 = vrsqrt.pop %v559
      %v594 = vmul.f32 %v559, %v593
      %vm595 = vcmp.eq.f32.partialorder %v559, inf
      %v596 = vsel %vm595, %v559, %v594
      %vm597 = vcmp.eq.f32.partialorder %v559, 0.0
      %v598 = vand.u32 %v559, 2147483648
      %v599 = vsel %vm597, %v598, %v596
      %v600 = vrsqrt.pop %v560
      %v601 = vmul.f32 %v560, %v600
      %vm602 = vcmp.eq.f32.partialorder %v560, inf
      %v603 = vsel %vm602, %v560, %v601
      %vm604 = vcmp.eq.f32.partialorder %v560, 0.0
      %v605 = vand.u32 %v560, 2147483648
      %v606 = vsel %vm604, %v605, %v603
      %v607 = vrsqrt.pop %v561
      %v608 = vmul.f32 %v561, %v607
      %vm609 = vcmp.eq.f32.partialorder %v561, inf
      %v610 = vsel %vm609, %v561, %v608
      %vm611 = vcmp.eq.f32.partialorder %v561, 0.0
      %v612 = vand.u32 %v561, 2147483648
      %v613 = vsel %vm611, %v612, %v610
      %v614 = vrsqrt.pop %v562
      %v615 = vmul.f32 %v562, %v614
      %vm616 = vcmp.eq.f32.partialorder %v562, inf
      %v617 = vsel %vm616, %v562, %v615
      %vm618 = vcmp.eq.f32.partialorder %v562, 0.0
      %v619 = vand.u32 %v562, 2147483648
      %v620 = vsel %vm618, %v619, %v617
      %v621 = vrsqrt.pop %v563
      %v622 = vmul.f32 %v563, %v621
      %vm623 = vcmp.eq.f32.partialorder %v563, inf
      %v624 = vsel %vm623, %v563, %v622
      %vm625 = vcmp.eq.f32.partialorder %v563, 0.0
      %v626 = vand.u32 %v563, 2147483648
      %v627 = vsel %vm625, %v626, %v624
      %v628 = vrsqrt.pop %v564
      %v629 = vmul.f32 %v564, %v628
      %vm630 = vcmp.eq.f32.partialorder %v564, inf
      %v631 = vsel %vm630, %v564, %v629
      %vm632 = vcmp.eq.f32.partialorder %v564, 0.0
      %v633 = vand.u32 %v564, 2147483648
      %v634 = vsel %vm632, %v633, %v631
      %v635 = vrsqrt.pop %v565
      %v636 = vmul.f32 %v565, %v635
      %vm637 = vcmp.eq.f32.partialorder %v565, inf
      %v638 = vsel %vm637, %v565, %v636
      %vm639 = vcmp.eq.f32.partialorder %v565, 0.0
      %v640 = vand.u32 %v565, 2147483648
      %v641 = vsel %vm639, %v640, %v638
      %v642 = vrsqrt.pop %v566
      %v643 = vmul.f32 %v566, %v642
      %vm644 = vcmp.eq.f32.partialorder %v566, inf
      %v645 = vsel %vm644, %v566, %v643
      %vm646 = vcmp.eq.f32.partialorder %v566, 0.0
      %v647 = vand.u32 %v566, 2147483648
      %v648 = vsel %vm646, %v647, %v645
      %v649 = vrsqrt.pop %v567
      %v650 = vmul.f32 %v567, %v649
      %vm651 = vcmp.eq.f32.partialorder %v567, inf
      %v652 = vsel %vm651, %v567, %v650
      %vm653 = vcmp.eq.f32.partialorder %v567, 0.0
      %v654 = vand.u32 %v567, 2147483648
      %v655 = vsel %vm653, %v654, %v652
      %v656 = vrsqrt.pop %v568
      %v657 = vmul.f32 %v568, %v656
      %vm658 = vcmp.eq.f32.partialorder %v568, inf
      %v659 = vsel %vm658, %v568, %v657
      %vm660 = vcmp.eq.f32.partialorder %v568, 0.0
      %v661 = vand.u32 %v568, 2147483648
      %v662 = vsel %vm660, %v661, %v659
      %v663 = vrsqrt.pop %v569
      %v664 = vmul.f32 %v569, %v663
      %vm665 = vcmp.eq.f32.partialorder %v569, inf
      %v666 = vsel %vm665, %v569, %v664
      %vm667 = vcmp.eq.f32.partialorder %v569, 0.0
      %v668 = vand.u32 %v569, 2147483648
      %v669 = vsel %vm667, %v668, %v666
      %v670 = vrsqrt.pop %v570
      %v671 = vmul.f32 %v570, %v670
      %vm672 = vcmp.eq.f32.partialorder %v570, inf
      %v673 = vsel %vm672, %v570, %v671
      %vm674 = vcmp.eq.f32.partialorder %v570, 0.0
      %v675 = vand.u32 %v570, 2147483648
      %v676 = vsel %vm674, %v675, %v673
      %v677 = vrsqrt.pop %v571
      %v678 = vmul.f32 %v571, %v677
      %vm679 = vcmp.eq.f32.partialorder %v571, inf
      %v680 = vsel %vm679, %v571, %v678
      %vm681 = vcmp.eq.f32.partialorder %v571, 0.0
      %v682 = vand.u32 %v571, 2147483648
      %v683 = vsel %vm681, %v682, %v680
      %v684 = vadd.f32 %v578, 1e-05
      %v685 = vadd.f32 %v585, 1e-05
      %v686 = vadd.f32 %v592, 1e-05
      %v687 = vadd.f32 %v599, 1e-05
      %v688 = vadd.f32 %v606, 1e-05
      %v689 = vadd.f32 %v613, 1e-05
      %v690 = vadd.f32 %v620, 1e-05
      %v691 = vadd.f32 %v627, 1e-05
      %v692 = vadd.f32 %v634, 1e-05
      %v693 = vadd.f32 %v641, 1e-05
      %v694 = vadd.f32 %v648, 1e-05
      %v695 = vadd.f32 %v655, 1e-05
      %v696 = vadd.f32 %v662, 1e-05
      %v697 = vadd.f32 %v669, 1e-05
      %v698 = vadd.f32 %v676, 1e-05
      %v699 = vadd.f32 %v683, 1e-05
      %v716 = vcombine.low %v684, %v685
      %v717 = vcombine.low %v686, %v687
      %v718 = vcombine.low %v688, %v689
      %v719 = vcombine.low %v690, %v691
      %v720 = vcombine.low %v692, %v693
      %v721 = vcombine.low %v694, %v695
      %v722 = vcombine.low %v696, %v697
      %v723 = vcombine.low %v698, %v699
      %v732 = vrcp.pop %v716
      %v733 = vmul.f32 %v404, %v732
      %v734 = vrcp.pop %v717
      %v735 = vmul.f32 %v405, %v734
      %v736 = vrcp.pop %v718
      %v737 = vmul.f32 %v406, %v736
      %v738 = vrcp.pop %v719
      %v739 = vmul.f32 %v407, %v738
      %v740 = vrcp.pop %v720
      %v741 = vmul.f32 %v408, %v740
      %v742 = vrcp.pop %v721
      %v743 = vmul.f32 %v409, %v742
      %v744 = vrcp.pop %v722
      %v745 = vmul.f32 %v410, %v744
      %v746 = vrcp.pop %v723
      %v747 = vmul.f32 %v411, %v746
      %v748 = vld [vmem:[%s1] sm:$0xf]
      %750 = vset.pattern.permute.xlu0 0
      %751 = vperm.xlu0 %750, %v748
      %v752 = vpop.permute.xlu0 %751
      %v754 = vunpack.c.l.s4 839922192
      %v755 = vunpack.c.0.s8 %v754
      %v756 = vlaneseq
      %v757 = vshrl.u32 %v756, 7
      %v758 = vsub.s32 %v755, %v757
      %v759 = vrot.slane %v752, %v758
      %v761 = vmul.f32 %v733, %v759
      %v762 = vmul.f32 %v735, %v759
      %v763 = vmul.f32 %v737, %v759
      %v764 = vmul.f32 %v739, %v759
      %v765 = vmul.f32 %v741, %v759
      %v766 = vmul.f32 %v743, %v759
      %v767 = vmul.f32 %v745, %v759
      %v768 = vmul.f32 %v747, %v759
      %v769 = vld [vmem:[%s2] sm:$0xf]
      %771 = vset.pattern.permute.xlu0 0
      %772 = vperm.xlu0 %771, %v769
      %v773 = vpop.permute.xlu0 %772
      %v775 = vunpack.c.l.s4 839922192
      %v776 = vunpack.c.0.s8 %v775
      %v777 = vlaneseq
      %v778 = vshrl.u32 %v777, 7
      %v779 = vsub.s32 %v776, %v778
      %v780 = vrot.slane %v773, %v779
      %v782 = vadd.f32 %v761, %v780
      %v783 = vadd.f32 %v762, %v780
      %v784 = vadd.f32 %v763, %v780
      %v785 = vadd.f32 %v764, %v780
      %v786 = vadd.f32 %v765, %v780
      %v787 = vadd.f32 %v766, %v780
      %v788 = vadd.f32 %v767, %v780
      %v789 = vadd.f32 %v768, %v780
      %790 = vst [vmem:[%s208] sm:$0xff] %v782
      %791 = vst [vmem:[%s208 + $0x8] sm:$0xff] %v783
      %792 = vst [vmem:[%s208 + $0x10] sm:$0xff] %v784
      %793 = vst [vmem:[%s208 + $0x18] sm:$0xff] %v785
      %794 = vst [vmem:[%s208 + $0x20] sm:$0xff] %v786
      %795 = vst [vmem:[%s208 + $0x28] sm:$0xff] %v787
      %796 = vst [vmem:[%s208 + $0x30] sm:$0xff] %v788
      %797 = vst [vmem:[%s208 + $0x38] sm:$0xff] %v789
      %s798 = smul.u32 16, %s19
      %p799 = scmp.lt.s32.totalorder %s18, 1
      %s800 = scalar_select %p799, %s18, 1
      %p801 = scmp.lt.s32.totalorder %s798, 31
      %s802 = scalar_select %p801, %s798, 31
      %s803 = smul.addr %s800, 32
      %s804 = sadd.s32 %s802, %s803
      %s805 = smul.addr %s804, 4
      %s806 = scalar_lea.vmem %s3, %s805
      // Predicated region
      $region33: #{_lambda_.1} parent=31 // pred_check
        %p807 = pneg %p116
      $region34: #{_lambda_.1} parent=31 // pred_check_branch
        %809 = sbr.rel (%p807) target = $region36
      $region35: #{_lambda_.1} parent=31 // pred_region
        %s810 = smul.u32 16, %s19
      $region36: #{_lambda_.1} parent=31 // pred_fallthru
        _
    $region32: #{_lambda_.1} parent=5 // pred_fallthru
      _
    %p811 = scmp.le.s32.totalorder 2, %s9
    // Predicated region
    $region37: #{_lambda_.1} parent=5 // pred_check
      %p812 = pneg %p811
    $region38: #{_lambda_.1} parent=5 // pred_check_branch
      %814 = sbr.rel (%p812) target = $region40
    $region39: #{_lambda_.1} parent=5 // pred_region
      %s815 = ssub.s32 %s9, 2
      // Predicated region
      $region41: #{_lambda_.1} parent=39 // pred_check
        %p816 = pneg %p122
      $region42: #{_lambda_.1} parent=39 // pred_check_branch
        %818 = sbr.rel (%p816) target = $region44
      $region43: #{_lambda_.1} parent=39 // pred_region
        %s819 = smul.u32 16, %s21
        %p820 = scmp.lt.s32.totalorder %s20, 1
        %s821 = scalar_select %p820, %s20, 1
        %p822 = scmp.lt.s32.totalorder %s819, 31
        %s823 = scalar_select %p822, %s819, 31
        %s824 = smul.addr %s821, 32
        %s825 = sadd.s32 %s823, %s824
        %s826 = smul.addr %s825, 4
        %s827 = scalar_lea.vmem %s3, %s826
      $region44: #{_lambda_.1} parent=39 // pred_fallthru
        _
    $region40: #{_lambda_.1} parent=5 // pred_fallthru
      _
  $region6: #{_lambda_.1} parent=0 // loop_footer
    %s13 = sadd.s32 1, %s9
  $region7: #{_lambda_.1} parent=0 // loop_footer_branch
    %8 = sbr.rel target = $region3
  $region8: #{_lambda_.1} parent=0 // loop_exit
    _

</llo_original>
